<compile_context>
chip_gen: v6e
topology: v6e:2x2x1
jax: 0.10.0
libtpu: 0.0.40
codegen_flags: <defaults>
</compile_context>

<pallas_src>
import functools

import jax
import jax.numpy as jnp
from jax.experimental import pallas as pl
from jax.experimental.pallas import tpu as pltpu


def _round_up(x: int, m: int) -> int:
    return ((x + m - 1) // m) * m


def _head_kernel(seed_ref, x_ref, w1_ref, b1_ref, w2_ref, b2_ref,
                 logits_ref, feat_ref, *, dropout_p: float, tile_m: int,
                 inner_dim: int):
    # dense: x @ W1 + b1   (MXU matmul, f32 accumulation)
    h = jnp.dot(x_ref[...], w1_ref[...], preferred_element_type=jnp.float32)
    h = h + b1_ref[...].astype(jnp.float32)
    # ReLU
    h = jnp.maximum(h, jnp.float32(0.0))

    # Dropout (inverted-dropout scaling, like torch.nn.Dropout in train mode).
    # NOTE: mask matches PyTorch only in distribution, not bit-for-bit.
    if dropout_p > 0.0:
        base_row = pl.program_id(0) * tile_m
        rows = jax.lax.broadcasted_iota(jnp.int32, h.shape, 0) + base_row
        cols = jax.lax.broadcasted_iota(jnp.int32, h.shape, 1)
        ctr = (rows * inner_dim + cols).astype(jnp.uint32)
        key = ctr + seed_ref[0].astype(jnp.uint32) * jnp.uint32(0x9E3779B9)
        # lowbias32-style integer mix (xor/shift/mul on the VPU)
        key = key ^ (key >> 16)
        key = key * jnp.uint32(0x7FEB352D)
        key = key ^ (key >> 15)
        key = key * jnp.uint32(0x846CA68B)
        key = key ^ (key >> 16)
        threshold = jnp.uint32(min(int(dropout_p * 4294967296.0), 4294967295))
        keep = key >= threshold            # single uint32 compare per element
        h = jnp.where(keep, h * jnp.float32(1.0 / (1.0 - dropout_p)),
                      jnp.float32(0.0))

    # features output (second tuple element returned by the torch module)
    feat_ref[...] = h.astype(feat_ref.dtype)
    # out_proj: features @ W2 + b2  (W2 lane-padded to a multiple of 128)
    logits = jnp.dot(h.astype(feat_ref.dtype), w2_ref[...],
                     preferred_element_type=jnp.float32)
    logits = logits + b2_ref[...].astype(jnp.float32)
    logits_ref[...] = logits.astype(logits_ref.dtype)


def gpt2_classification_head(hidden_states, w1, b1, w2, b2, *,
                             dropout_p: float = 0.0, seed: int = 0,
                             tile_m_max: int = 512):
    """hidden_states: [B, S, input_dim] -> (logits [B,S,C], features [B,S,inner])."""
    assert 0.0 <= dropout_p < 1.0, "dropout_p must be in [0, 1)"
    B, S, D = hidden_states.shape
    inner = w1.shape[1]
    C = w2.shape[1]
    M = B * S
    dtype = hidden_states.dtype

    # Row tiling: multiple of 8 (sublane), capped at tile_m_max; pad M up.
    tile_m = min(tile_m_max, _round_up(M, 8))
    m_pad = _round_up(M, tile_m)
    n_tiles = m_pad // tile_m

    # Lane-dense logits: pad class dim to a multiple of 128 (sliced back below).
    c_pad = _round_up(C, 128)

    x = hidden_states.reshape(M, D)
    if m_pad != M:
        x = jnp.pad(x, ((0, m_pad - M), (0, 0)))
    b1r = b1.reshape(1, inner)
    w2p = jnp.zeros((inner, c_pad), w2.dtype).at[:, :C].set(w2)
    b2p = jnp.zeros((1, c_pad), b2.dtype).at[:, :C].set(b2.reshape(1, C))
    seed_arr = jnp.array([seed], dtype=jnp.int32)

    kernel = functools.partial(_head_kernel, dropout_p=float(dropout_p),
                               tile_m=tile_m, inner_dim=inner)

    grid_spec = pltpu.PrefetchScalarGridSpec(
        num_scalar_prefetch=1,                    # seed lands in SMEM
        grid=(n_tiles,),
        in_specs=[
            pl.BlockSpec((tile_m, D), lambda i, _: (i, 0)),       # x tile
            pl.BlockSpec((D, inner), lambda i, _: (0, 0)),        # W1 (resident)
            pl.BlockSpec((1, inner), lambda i, _: (0, 0)),        # b1 (resident)
            pl.BlockSpec((inner, c_pad), lambda i, _: (0, 0)),    # W2 (resident)
            pl.BlockSpec((1, c_pad), lambda i, _: (0, 0)),        # b2 (resident)
        ],
        out_specs=(
            pl.BlockSpec((tile_m, c_pad), lambda i, _: (i, 0)),   # logits tile
            pl.BlockSpec((tile_m, inner), lambda i, _: (i, 0)),   # features tile
        ),
    )

    logits_p, feats_p = pl.pallas_call(
        kernel,
        out_shape=(
            jax.ShapeDtypeStruct((m_pad, c_pad), dtype),
            jax.ShapeDtypeStruct((m_pad, inner), dtype),
        ),
        grid_spec=grid_spec,
        compiler_params=pltpu.CompilerParams(
            dimension_semantics=("parallel",)),
    )(seed_arr, x, w1, b1r, w2p, b2p)

    logits = logits_p[:M, :C].reshape(B, S, C)
    features = feats_p[:M, :].reshape(B, S, inner)
    return logits, features


if __name__ == "__main__":
    # Small, module-consistent shapes.
    batch, seq = 2, 8
    input_dim, inner_dim, num_classes = 32, 128, 8
    pooler_dropout = 0.1

    key = jax.random.PRNGKey(0)
    k_x, k_w1, k_b1, k_w2, k_b2 = jax.random.split(key, 5)

    hidden_states = jax.random.normal(k_x, (batch, seq, input_dim), jnp.float32)
    # Deterministic synthetic parameters (shapes follow nn.Linear, stored as
    # (in, out) so the kernel computes x @ W + b == torch's x @ W.T + b).
    w1 = jax.random.normal(k_w1, (input_dim, inner_dim), jnp.float32) * 0.02
    b1 = jax.random.normal(k_b1, (inner_dim,), jnp.float32) * 0.02
    w2 = jax.random.normal(k_w2, (inner_dim, num_classes), jnp.float32) * 0.02
    b2 = jax.random.normal(k_b2, (num_classes,), jnp.float32) * 0.02

    logits, features = gpt2_classification_head(
        hidden_states, w1, b1, w2, b2, dropout_p=pooler_dropout, seed=1234)
    jax.block_until_ready((logits, features))

    assert logits.shape == (batch, seq, num_classes)
    assert features.shape == (batch, seq, inner_dim)

    # Deterministic comparison with dropout disabled.
    # TODO(synk): bit-exact torch dropout mask has no Pallas equivalent.
    logits0, features0 = gpt2_classification_head(
        hidden_states, w1, b1, w2, b2, dropout_p=0.0)
    ref_feat = jnp.maximum(hidden_states @ w1 + b1, 0.0)
    ref_logits = ref_feat @ w2 + b2
    assert jnp.allclose(features0, ref_feat, atol=1e-5, rtol=1e-5)
    assert jnp.allclose(logits0, ref_logits, atol=1e-5, rtol=1e-5)

    # Dropout structural check: each feature is either dropped (exact 0) or the
    # ReLU activation scaled by 1/(1-p).
    scale = 1.0 / (1.0 - pooler_dropout)
    ok = (features == 0.0) | jnp.isclose(features, ref_feat * scale,
                                         atol=1e-5, rtol=1e-4)
    assert bool(jnp.all(ok))

    print("KERNEL_OK")
</pallas_src>

<mosaic_0001>
module attributes {stable_mosaic.version = 11 : i64} {
  func.func @_head_kernel(%arg0: i32, %arg1: memref<1xi32, #tpu.memory_space<smem>>, %arg2: memref<16x32xf32, #tpu.memory_space<vmem>>, %arg3: memref<32x128xf32, #tpu.memory_space<vmem>>, %arg4: memref<1x128xf32, #tpu.memory_space<vmem>>, %arg5: memref<128x128xf32, #tpu.memory_space<vmem>>, %arg6: memref<1x128xf32, #tpu.memory_space<vmem>>, %arg7: memref<16x128xf32, #tpu.memory_space<vmem>>, %arg8: memref<16x128xf32, #tpu.memory_space<vmem>>) attributes {dimension_semantics = [#tpu.dimension_semantics<parallel>], iteration_bounds = array<i64: 1>, scalar_prefetch = 1 : i64, scratch_operands = 0 : i64, tpu.core_type = #tpu.core_type<tc>, window_params = [{transform_indices = @transform_0, window_bounds = array<i64: 16, 32>}, {pipeline_mode = #tpu.pipeline_mode<synchronous>, transform_indices = @transform_1, window_bounds = array<i64: 32, 128>}, {pipeline_mode = #tpu.pipeline_mode<synchronous>, transform_indices = @transform_2, window_bounds = array<i64: 1, 128>}, {pipeline_mode = #tpu.pipeline_mode<synchronous>, transform_indices = @transform_3, window_bounds = array<i64: 128, 128>}, {pipeline_mode = #tpu.pipeline_mode<synchronous>, transform_indices = @transform_4, window_bounds = array<i64: 1, 128>}, {transform_indices = @transform_5, window_bounds = array<i64: 16, 128>}, {transform_indices = @transform_6, window_bounds = array<i64: 16, 128>}]} {
    %c0 = arith.constant 0 : index
    %c0_0 = arith.constant 0 : index
    %0 = vector.load %arg2[%c0, %c0_0] : memref<16x32xf32, #tpu.memory_space<vmem>>, vector<16x32xf32>
    %c0_1 = arith.constant 0 : index
    %c0_2 = arith.constant 0 : index
    %1 = vector.load %arg3[%c0_1, %c0_2] : memref<32x128xf32, #tpu.memory_space<vmem>>, vector<32x128xf32>
    %cst = arith.constant dense<0.000000e+00> : vector<16x128xf32>
    %2 = tpu.matmul %0, %1, %cst {dimension_numbers = #tpu.dot_dimension_numbers<[1], [0], [0], [1], [0, 0, 1, 1], [], []>} : vector<16x32xf32>, vector<32x128xf32>, vector<16x128xf32> -> vector<16x128xf32>
    %c0_3 = arith.constant 0 : index
    %c0_4 = arith.constant 0 : index
    %3 = vector.load %arg4[%c0_3, %c0_4] : memref<1x128xf32, #tpu.memory_space<vmem>>, vector<1x128xf32>
    %4 = vector.broadcast %3 : vector<1x128xf32> to vector<16x128xf32>
    %5 = arith.addf %2, %4 : vector<16x128xf32>
    %cst_5 = arith.constant 0.000000e+00 : f32
    %6 = vector.broadcast %cst_5 : f32 to vector<16x128xf32>
    %7 = arith.maximumf %5, %6 : vector<16x128xf32>
    %c16_i32 = arith.constant 16 : i32
    %8 = arith.muli %arg0, %c16_i32 : i32
    %9 = tpu.iota {dimensions = array<i32: 0>} : vector<16x128xi32>
    %10 = vector.broadcast %8 : i32 to vector<16x128xi32>
    %11 = arith.addi %9, %10 : vector<16x128xi32>
    %12 = tpu.iota {dimensions = array<i32: 1>} : vector<16x128xi32>
    %c128_i32 = arith.constant 128 : i32
    %13 = vector.broadcast %c128_i32 : i32 to vector<16x128xi32>
    %14 = arith.muli %11, %13 : vector<16x128xi32>
    %15 = arith.addi %14, %12 : vector<16x128xi32>
    %c0_6 = arith.constant 0 : index
    %16 = memref.load %arg1[%c0_6] : memref<1xi32, #tpu.memory_space<smem>>
    %c-1640531527_i32 = arith.constant -1640531527 : i32
    %17 = arith.muli %16, %c-1640531527_i32 : i32
    %18 = vector.broadcast %17 : i32 to vector<16x128xi32>
    %19 = arith.addi %15, %18 : vector<16x128xi32>
    %c16_i32_7 = arith.constant 16 : i32
    %20 = vector.broadcast %c16_i32_7 : i32 to vector<16x128xi32>
    %21 = arith.shrui %19, %20 : vector<16x128xi32>
    %22 = arith.xori %19, %21 : vector<16x128xi32>
    %c2146121005_i32 = arith.constant 2146121005 : i32
    %23 = vector.broadcast %c2146121005_i32 : i32 to vector<16x128xi32>
    %24 = arith.muli %22, %23 : vector<16x128xi32>
    %c15_i32 = arith.constant 15 : i32
    %25 = vector.broadcast %c15_i32 : i32 to vector<16x128xi32>
    %26 = arith.shrui %24, %25 : vector<16x128xi32>
    %27 = arith.xori %24, %26 : vector<16x128xi32>
    %c-2073254261_i32 = arith.constant -2073254261 : i32
    %28 = vector.broadcast %c-2073254261_i32 : i32 to vector<16x128xi32>
    %29 = arith.muli %27, %28 : vector<16x128xi32>
    %c16_i32_8 = arith.constant 16 : i32
    %30 = vector.broadcast %c16_i32_8 : i32 to vector<16x128xi32>
    %31 = arith.shrui %29, %30 : vector<16x128xi32>
    %32 = arith.xori %29, %31 : vector<16x128xi32>
    %c429496729_i32 = arith.constant 429496729 : i32
    %33 = vector.broadcast %c429496729_i32 : i32 to vector<16x128xi32>
    %34 = arith.cmpi uge, %32, %33 : vector<16x128xi32>
    %cst_9 = arith.constant 1.11111116 : f32
    %35 = vector.broadcast %cst_9 : f32 to vector<16x128xf32>
    %36 = arith.mulf %7, %35 : vector<16x128xf32>
    %cst_10 = arith.constant 0.000000e+00 : f32
    %37 = vector.broadcast %cst_10 : f32 to vector<16x128xf32>
    %38 = arith.select %34, %36, %37 : vector<16x128xi1>, vector<16x128xf32>
    %c0_11 = arith.constant 0 : index
    %c0_12 = arith.constant 0 : index
    %39 = vector.load %arg8[%c0_11, %c0_12] : memref<16x128xf32, #tpu.memory_space<vmem>>, vector<16x128xf32>
    tpu.vector_store %arg8[%c0_11, %c0_12], %38 {strides = array<i32>} : memref<16x128xf32, #tpu.memory_space<vmem>>, vector<16x128xf32>,
    %c0_13 = arith.constant 0 : index
    %c0_14 = arith.constant 0 : index
    %40 = vector.load %arg5[%c0_13, %c0_14] : memref<128x128xf32, #tpu.memory_space<vmem>>, vector<128x128xf32>
    %cst_15 = arith.constant dense<0.000000e+00> : vector<16x128xf32>
    %41 = tpu.matmul %38, %40, %cst_15 {dimension_numbers = #tpu.dot_dimension_numbers<[1], [0], [0], [1], [0, 0, 1, 1], [], []>} : vector<16x128xf32>, vector<128x128xf32>, vector<16x128xf32> -> vector<16x128xf32>
    %c0_16 = arith.constant 0 : index
    %c0_17 = arith.constant 0 : index
    %42 = vector.load %arg6[%c0_16, %c0_17] : memref<1x128xf32, #tpu.memory_space<vmem>>, vector<1x128xf32>
    %43 = vector.broadcast %42 : vector<1x128xf32> to vector<16x128xf32>
    %44 = arith.addf %41, %43 : vector<16x128xf32>
    %c0_18 = arith.constant 0 : index
    %c0_19 = arith.constant 0 : index
    %45 = vector.load %arg7[%c0_18, %c0_19] : memref<16x128xf32, #tpu.memory_space<vmem>>, vector<16x128xf32>
    tpu.vector_store %arg7[%c0_18, %c0_19], %44 {strides = array<i32>} : memref<16x128xf32, #tpu.memory_space<vmem>>, vector<16x128xf32>,
    return
  }
  func.func @transform_0(%arg0: i32, %arg1: memref<1xi32, #tpu.memory_space<smem>>) -> (i32, i32) {
    %c0_i32 = arith.constant 0 : i32
    %c0_i32_0 = arith.constant 0 : i32
    return %arg0, %c0_i32 : i32, i32
  }
  func.func @transform_1(%arg0: i32, %arg1: memref<1xi32, #tpu.memory_space<smem>>) -> (i32, i32) {
    %c0_i32 = arith.constant 0 : i32
    %c0_i32_0 = arith.constant 0 : i32
    %c0_i32_1 = arith.constant 0 : i32
    return %c0_i32, %c0_i32_0 : i32, i32
  }
  func.func @transform_2(%arg0: i32, %arg1: memref<1xi32, #tpu.memory_space<smem>>) -> (i32, i32) {
    %c0_i32 = arith.constant 0 : i32
    %c0_i32_0 = arith.constant 0 : i32
    %c0_i32_1 = arith.constant 0 : i32
    return %c0_i32, %c0_i32_0 : i32, i32
  }
  func.func @transform_3(%arg0: i32, %arg1: memref<1xi32, #tpu.memory_space<smem>>) -> (i32, i32) {
    %c0_i32 = arith.constant 0 : i32
    %c0_i32_0 = arith.constant 0 : i32
    %c0_i32_1 = arith.constant 0 : i32
    return %c0_i32, %c0_i32_0 : i32, i32
  }
  func.func @transform_4(%arg0: i32, %arg1: memref<1xi32, #tpu.memory_space<smem>>) -> (i32, i32) {
    %c0_i32 = arith.constant 0 : i32
    %c0_i32_0 = arith.constant 0 : i32
    %c0_i32_1 = arith.constant 0 : i32
    return %c0_i32, %c0_i32_0 : i32, i32
  }
  func.func @transform_5(%arg0: i32, %arg1: memref<1xi32, #tpu.memory_space<smem>>) -> (i32, i32) {
    %c0_i32 = arith.constant 0 : i32
    %c0_i32_0 = arith.constant 0 : i32
    return %arg0, %c0_i32 : i32, i32
  }
  func.func @transform_6(%arg0: i32, %arg1: memref<1xi32, #tpu.memory_space<smem>>) -> (i32, i32) {
    %c0_i32 = arith.constant 0 : i32
    %c0_i32_0 = arith.constant 0 : i32
    return %arg0, %c0_i32 : i32, i32
  }
}

</mosaic_0001>

<llo_original>
// kernel: tpu_custom_call.1
$region0: #{tpu_custom_call.1}
  #allocation0 [shape = 'u32[]', space=smem, size = 0x4, offset = 0x4, fixed_abs, tag = 'smem constant byte address 0x4 - core index']
  #allocation1 [shape = 'u32[144,128]{1,0:T(1,128)}', space=vmem, size = 0x12000, scoped, tag = 'internal scratch']
  #allocation2 [shape = 's32[1]{0}', space=sflag, size = 0x4, scoped, tag = 'scoped memory for tpu_custom_call.1']
  #allocation3 [shape = 's32[1]{0:T(128)S(6)}', space=smem, size = 0x200, scoped, tag = 'prefetched SMEM operand 0']
  %s0 = inlined_call_operand.<no memory space> [shape: s32[1], index: 0, kind: input, shape index: {}]
  %s1 = inlined_call_operand.hbm [shape: f32[16,32], index: 1, kind: input, shape index: {}]
  %s2 = inlined_call_operand.hbm [shape: f32[32,128], index: 2, kind: input, shape index: {}]
  %s3 = inlined_call_operand.vmem [shape: f32[1,128], index: 3, kind: input, shape index: {}]
  %s4 = inlined_call_operand.hbm [shape: f32[128,128], index: 4, kind: input, shape index: {}]
  %s5 = inlined_call_operand.vmem [shape: f32[1,128], index: 5, kind: input, shape index: {}]
  %s6 = inlined_call_operand.hbm [shape: f32[16,128], index: 6, kind: output, shape index: {0}]
  %s7 = inlined_call_operand.hbm [shape: f32[16,128], index: 7, kind: output, shape index: {1}]
  %8 = xla_tuple %s6, %s7
  %s9 = sld [smem:[#allocation0]]
  $region50: #{tpu_custom_call.1} parent=0
    _
  %s11 = ssub.s32 1, %s9
  %s12 = scalar_select 0, %s11, %s9
  %13 = sst [smem:[#allocation3]] %s0
  $region1: #{tpu_custom_call.1} parent=0
    #allocation4 [shape = 'u8[8192]{0}', space=vmem, size = 0x2000, scoped, tag = 'input window, operand 1, single buffered']
    #allocation5 [shape = 's32[1]{0}', space=sflag, size = 0x4, scoped, tag = 'scoped memory for tpu_custom_call.1']
    #allocation6 [shape = 's32[1]{0}', space=sflag, size = 0x4, scoped, tag = 'scoped memory for tpu_custom_call.1']
    #allocation7 [shape = 'u8[16384]{0}', space=vmem, size = 0x4000, scoped, tag = 'input window, operand 2, single buffered']
    #allocation8 [shape = 's32[1]{0}', space=sflag, size = 0x4, scoped, tag = 'scoped memory for tpu_custom_call.1']
    #allocation9 [shape = 'u8[65536]{0}', space=vmem, size = 0x10000, scoped, tag = 'input window, operand 4, single buffered']
    #allocation10 [shape = 'u8[8192]{0}', space=vmem, size = 0x2000, scoped, tag = 'output window, operand 0, single buffered']
    #allocation11 [shape = 'u8[8192]{0}', space=vmem, size = 0x2000, scoped, tag = 'output window, operand 1, single buffered']
    #allocation12 [shape = 's32[1]{0}', space=sflag, size = 0x4, scoped, tag = 'scoped memory for tpu_custom_call.1']
    %14 = vsyncpa [#allocation5], 0
    %15 = vsyncpa [#allocation8], 0
    %16 = vsyncpa [#allocation6], 0
    %17 = vsyncpa [#allocation12], 0
    // Predicated region
    $region2: #{tpu_custom_call.1} parent=1 // pred_check
      _
    $region3: #{tpu_custom_call.1} parent=1 // pred_check_branch
      %19 = sbr.rel (0) target = $region5
    $region4: #{tpu_custom_call.1} parent=1 // pred_region
      %s21 = ssub.s32 256, 256
      %22 = vsyncadd [#allocation5], %s21
      %s23 = sshll.u32 [#allocation4], 4
      %s24 = int_to_ptr.vmem [resolvable:$true] %s23
      %29 = dma.hbm_to_vmem [thread:$0]  %s1, 256, %s24, [#allocation5], 128, 128, 8
    $region5: #{tpu_custom_call.1} parent=1 // pred_fallthru
      _
    // Predicated region
    $region6: #{tpu_custom_call.1} parent=1 // pred_check
      _
    $region7: #{tpu_custom_call.1} parent=1 // pred_check_branch
      %31 = sbr.rel (0) target = $region9
    $region8: #{tpu_custom_call.1} parent=1 // pred_region
      %s33 = ssub.s32 512, 512
      %34 = vsyncadd [#allocation8], %s33
      %s35 = sshll.u32 [#allocation7], 4
      %s36 = int_to_ptr.vmem [resolvable:$true] %s35
      %41 = dma.hbm_to_vmem [thread:$0]  %s2, 512, %s36, [#allocation8], 128, 128, 8
    $region9: #{tpu_custom_call.1} parent=1 // pred_fallthru
      _
    // Predicated region
    $region10: #{tpu_custom_call.1} parent=1 // pred_check
      _
    $region11: #{tpu_custom_call.1} parent=1 // pred_check_branch
      %43 = sbr.rel (0) target = $region13
    $region12: #{tpu_custom_call.1} parent=1 // pred_region
      _
    $region13: #{tpu_custom_call.1} parent=1 // pred_fallthru
      _
    // Predicated region
    $region14: #{tpu_custom_call.1} parent=1 // pred_check
      _
    $region15: #{tpu_custom_call.1} parent=1 // pred_check_branch
      %45 = sbr.rel (0) target = $region17
    $region16: #{tpu_custom_call.1} parent=1 // pred_region
      %s47 = ssub.s32 2048, 2048
      %48 = vsyncadd [#allocation8], %s47
      %s49 = sshll.u32 [#allocation9], 4
      %s50 = int_to_ptr.vmem [resolvable:$true] %s49
      %55 = dma.hbm_to_vmem [thread:$0]  %s4, 2048, %s50, [#allocation8], 128, 128, 8
    $region17: #{tpu_custom_call.1} parent=1 // pred_fallthru
      _
    // Predicated region
    $region18: #{tpu_custom_call.1} parent=1 // pred_check
      _
    $region19: #{tpu_custom_call.1} parent=1 // pred_check_branch
      %57 = sbr.rel (0) target = $region21
    $region20: #{tpu_custom_call.1} parent=1 // pred_region
      _
    $region21: #{tpu_custom_call.1} parent=1 // pred_fallthru
      _
    // Predicated region
    $region22: #{tpu_custom_call.1} parent=1 // pred_check
      _
    $region23: #{tpu_custom_call.1} parent=1 // pred_check_branch
      %59 = sbr.rel (0) target = $region25
    $region24: #{tpu_custom_call.1} parent=1 // pred_region
      %60 = dma.done [#allocation5], 256
    $region25: #{tpu_custom_call.1} parent=1 // pred_fallthru
      _
    // Predicated region
    $region26: #{tpu_custom_call.1} parent=1 // pred_check
      _
    $region27: #{tpu_custom_call.1} parent=1 // pred_check_branch
      %62 = sbr.rel (0) target = $region29
    $region28: #{tpu_custom_call.1} parent=1 // pred_region
      %63 = dma.done [#allocation8], 512
    $region29: #{tpu_custom_call.1} parent=1 // pred_fallthru
      _
    // Predicated region
    $region30: #{tpu_custom_call.1} parent=1 // pred_check
      _
    $region31: #{tpu_custom_call.1} parent=1 // pred_check_branch
      %65 = sbr.rel (0) target = $region33
    $region32: #{tpu_custom_call.1} parent=1 // pred_region
      %66 = dma.done [#allocation8], 2048
    $region33: #{tpu_custom_call.1} parent=1 // pred_fallthru
      _
    %v67 = vld [vmem:[#allocation4] sm:$0xff]
    %v68 = vld [vmem:[#allocation4 + $0x8] sm:$0xff]
    %v69 = vld [vmem:[#allocation7] sm:$0xff]
    %v70 = vld [vmem:[#allocation7 + $0x8] sm:$0xff]
    %v71 = vld [vmem:[#allocation7 + $0x10] sm:$0xff]
    %v72 = vld [vmem:[#allocation7 + $0x18] sm:$0xff]
    %v73 = vld [vmem:[%s3] sm:$0x1]
    %v75 = vlaneseq
    %v76 = vshrl.u32 %v75, 7
    %v77 = vsub.s32 0, %v76
    %v78 = vrot.slane %v73, %v77
    %vm80 = vcmask 261120
    %v82 = vsel %vm80, %v67, 0
    %v85 = vsel %vm80, %v68, 0
    %87 = vmatprep.subr.mxu0 0.0
    %88 = vmatpush1.msra.mxu0 0.0
    %89 = vmatprep.subr.mxu0 0.0
    %90 = vmatpush1.msra.mxu0 0.0
    %91 = vmatprep.subr.mxu0 0.0
    %92 = vmatpush1.msra.mxu0 0.0
    %93 = vmatprep.subr.mxu0 0.0
    %94 = vmatpush1.msra.mxu0 0.0
    %95 = vmatprep.subr.mxu0 0.0
    %96 = vmatpush1.msra.mxu0 0.0
    %97 = vmatprep.subr.mxu0 0.0
    %98 = vmatpush1.msra.mxu0 0.0
    %99 = vmatprep.subr.mxu0 0.0
    %100 = vmatpush1.msra.mxu0 0.0
    %101 = vmatprep.subr.mxu0 0.0
    %102 = vmatpush1.msra.mxu0 0.0
    %103 = vmatprep.subr.mxu0 0.0
    %104 = vmatpush1.msra.mxu0 0.0
    %105 = vmatprep.subr.mxu0 0.0
    %106 = vmatpush1.msra.mxu0 0.0
    %107 = vmatprep.subr.mxu0 0.0
    %108 = vmatpush1.msra.mxu0 0.0
    %109 = vmatprep.subr.mxu0 0.0
    %110 = vmatpush1.msra.mxu0 0.0
    %111 = vmatprep.subr.mxu0 0.0
    %112 = vmatpush1.msra.mxu0 %v72
    %113 = vmatprep.subr.mxu0 0.0
    %114 = vmatpush1.msra.mxu0 %v71
    %115 = vmatprep.subr.mxu0 0.0
    %116 = vmatpush1.msra.mxu0 %v70
    %117 = vmatprep.subr.mxu0 0.0
    %118 = vmatpush1.msra.mxu0 %v69
    %119 = vmatprep.subr.mxu0 0.0
    %120 = vmatpush2.msra.mxu0 0.0
    %121 = vmatprep.subr.mxu0 0.0
    %122 = vmatpush2.msra.mxu0 0.0
    %123 = vmatprep.subr.mxu0 0.0
    %124 = vmatpush2.msra.mxu0 0.0
    %125 = vmatprep.subr.mxu0 0.0
    %126 = vmatpush2.msra.mxu0 0.0
    %127 = vmatprep.subr.mxu0 0.0
    %128 = vmatpush2.msra.mxu0 0.0
    %129 = vmatprep.subr.mxu0 0.0
    %130 = vmatpush2.msra.mxu0 0.0
    %131 = vmatprep.subr.mxu0 0.0
    %132 = vmatpush2.msra.mxu0 0.0
    %133 = vmatprep.subr.mxu0 0.0
    %134 = vmatpush2.msra.mxu0 0.0
    %135 = vmatprep.subr.mxu0 0.0
    %136 = vmatpush2.msra.mxu0 0.0
    %137 = vmatprep.subr.mxu0 0.0
    %138 = vmatpush2.msra.mxu0 0.0
    %139 = vmatprep.subr.mxu0 0.0
    %140 = vmatpush2.msra.mxu0 0.0
    %141 = vmatprep.subr.mxu0 0.0
    %142 = vmatpush2.msra.mxu0 0.0
    %143 = vmatprep.subr.mxu0 0.0
    %144 = vmatpush2.msra.mxu0 0.0
    %145 = vmatprep.subr.mxu0 0.0
    %146 = vmatpush2.msra.mxu0 0.0
    %147 = vmatprep.subr.mxu0 0.0
    %148 = vmatpush2.msra.mxu0 0.0
    %149 = vmatprep.subr.mxu0 0.0
    %150 = vmatpush2.msra.mxu0 0.0
    %151 = vmatprep.mubr.f32.mxu0 0.0
    %152 = vmatmul.mubr.f32.gmra.mxu0 %v82
    %v153 = vpop.f32.mrf.mxu0
    %v154 = vadd.f32 %v78, %v153
    %v155 = vpop.f32.mrf.mxu0
    %156 = vmatprep.mubr.f32.mxu0 0.0
    %157 = vmatmul.mubr.f32.gmra.mxu0 %v85
    %v158 = vpop.f32.mrf.mxu0
    %v159 = vadd.f32 %v78, %v158
    %v160 = vpop.f32.mrf.mxu0
    %161 = vdwg.mxu0
    %v162 = vmax.f32 %v154, 0.0
    %v163 = vmax.f32 %v159, 0.0
    %s164 = smul.u32 0, 16
    %v165 = vlaneseq
    %v166 = vshrl.u32 %v165, 7
    %v167 = vadd.s32 %v166, 8
    %v168 = vstv %s164
    %v169 = vadd.s32 %v166, %v168
    %v170 = vadd.s32 %v167, %v168
    %v171 = vlaneseq
    %v172 = vand.u32 %v171, 127
    %v173 = vmul.u32 %v169, 128
    %v174 = vmul.u32 %v170, 128
    %v175 = vadd.s32 %v173, %v172
    %v176 = vadd.s32 %v174, %v172
    %s177 = sld [smem:[#allocation3]]
    %s178 = smul.u32 %s177, 2654435769
    %v179 = vstv %s178
    %v180 = vadd.s32 %v175, %v179
    %v181 = vadd.s32 %v176, %v179
    %v182 = vshrl.u32 %v180, 16
    %v183 = vshrl.u32 %v181, 16
    %v184 = vxor.u32 %v180, %v182
    %v185 = vxor.u32 %v181, %v183
    %v186 = vmul.u32 %v184, 2146121005
    %v187 = vmul.u32 %v185, 2146121005
    %v188 = vshrl.u32 %v186, 15
    %v189 = vshrl.u32 %v187, 15
    %v190 = vxor.u32 %v186, %v188
    %v191 = vxor.u32 %v187, %v189
    %v192 = vmul.u32 %v190, 2221713035
    %v193 = vmul.u32 %v191, 2221713035
    %v194 = vshrl.u32 %v192, 16
    %v195 = vshrl.u32 %v193, 16
    %v196 = vxor.u32 %v192, %v194
    %v197 = vxor.u32 %v193, %v195
    %vm198 = vcmp.ge.u32.totalorder %v196, 429496729
    %vm199 = vcmp.ge.u32.totalorder %v197, 429496729
    %v200 = vmul.f32 %v162, 1.1111112
    %v201 = vmul.f32 %v163, 1.1111112
    %v202 = vsel %vm198, %v200, 0.0
    %v203 = vsel %vm199, %v201, 0.0
    %204 = vst [vmem:[#allocation11] sm:$0xff] %v202
    %205 = vst [vmem:[#allocation11 + $0x8] sm:$0xff] %v203
    %v206 = vld [vmem:[#allocation9] sm:$0xff]
    %v207 = vld [vmem:[#allocation9 + $0x8] sm:$0xff]
    %v208 = vld [vmem:[#allocation9 + $0x10] sm:$0xff]
    %v209 = vld [vmem:[#allocation9 + $0x18] sm:$0xff]
    %v210 = vld [vmem:[#allocation9 + $0x20] sm:$0xff]
    %v211 = vld [vmem:[#allocation9 + $0x28] sm:$0xff]
    %v212 = vld [vmem:[#allocation9 + $0x30] sm:$0xff]
    %v213 = vld [vmem:[#allocation9 + $0x38] sm:$0xff]
    %v214 = vld [vmem:[#allocation9 + $0x40] sm:$0xff]
    %v215 = vld [vmem:[#allocation9 + $0x48] sm:$0xff]
    %v216 = vld [vmem:[#allocation9 + $0x50] sm:$0xff]
    %v217 = vld [vmem:[#allocation9 + $0x58] sm:$0xff]
    %v218 = vld [vmem:[#allocation9 + $0x60] sm:$0xff]
    %v219 = vld [vmem:[#allocation9 + $0x68] sm:$0xff]
    %v220 = vld [vmem:[#allocation9 + $0x70] sm:$0xff]
    %v221 = vld [vmem:[#allocation9 + $0x78] sm:$0xff]
    %v222 = vld [vmem:[%s5] sm:$0x1]
    %v224 = vlaneseq
    %v225 = vshrl.u32 %v224, 7
    %v226 = vsub.s32 0, %v225
    %v227 = vrot.slane %v222, %v226
    %229 = vmatprep.subr.mxu0 0.0
    %230 = vmatpush1.msra.mxu0 %v221
    %231 = vmatprep.subr.mxu0 0.0
    %232 = vmatpush1.msra.mxu0 %v220
    %233 = vmatprep.subr.mxu0 0.0
    %234 = vmatpush1.msra.mxu0 %v219
    %235 = vmatprep.subr.mxu0 0.0
    %236 = vmatpush1.msra.mxu0 %v218
    %237 = vmatprep.subr.mxu0 0.0
    %238 = vmatpush1.msra.mxu0 %v217
    %239 = vmatprep.subr.mxu0 0.0
    %240 = vmatpush1.msra.mxu0 %v216
    %241 = vmatprep.subr.mxu0 0.0
    %242 = vmatpush1.msra.mxu0 %v215
    %243 = vmatprep.subr.mxu0 0.0
    %244 = vmatpush1.msra.mxu0 %v214
    %245 = vmatprep.subr.mxu0 0.0
    %246 = vmatpush1.msra.mxu0 %v213
    %247 = vmatprep.subr.mxu0 0.0
    %248 = vmatpush1.msra.mxu0 %v212
    %249 = vmatprep.subr.mxu0 0.0
    %250 = vmatpush1.msra.mxu0 %v211
    %251 = vmatprep.subr.mxu0 0.0
    %252 = vmatpush1.msra.mxu0 %v210
    %253 = vmatprep.subr.mxu0 0.0
    %254 = vmatpush1.msra.mxu0 %v209
    %255 = vmatprep.subr.mxu0 0.0
    %256 = vmatpush1.msra.mxu0 %v208
    %257 = vmatprep.subr.mxu0 0.0
    %258 = vmatpush1.msra.mxu0 %v207
    %259 = vmatprep.subr.mxu0 0.0
    %260 = vmatpush1.msra.mxu0 %v206
    %261 = vmatprep.subr.mxu0 0.0
    %262 = vmatpush2.msra.mxu0 0.0
    %263 = vmatprep.subr.mxu0 0.0
    %264 = vmatpush2.msra.mxu0 0.0
    %265 = vmatprep.subr.mxu0 0.0
    %266 = vmatpush2.msra.mxu0 0.0
    %267 = vmatprep.subr.mxu0 0.0
    %268 = vmatpush2.msra.mxu0 0.0
    %269 = vmatprep.subr.mxu0 0.0
    %270 = vmatpush2.msra.mxu0 0.0
    %271 = vmatprep.subr.mxu0 0.0
    %272 = vmatpush2.msra.mxu0 0.0
    %273 = vmatprep.subr.mxu0 0.0
    %274 = vmatpush2.msra.mxu0 0.0
    %275 = vmatprep.subr.mxu0 0.0
    %276 = vmatpush2.msra.mxu0 0.0
    %277 = vmatprep.subr.mxu0 0.0
    %278 = vmatpush2.msra.mxu0 0.0
    %279 = vmatprep.subr.mxu0 0.0
    %280 = vmatpush2.msra.mxu0 0.0
    %281 = vmatprep.subr.mxu0 0.0
    %282 = vmatpush2.msra.mxu0 0.0
    %283 = vmatprep.subr.mxu0 0.0
    %284 = vmatpush2.msra.mxu0 0.0
    %285 = vmatprep.subr.mxu0 0.0
    %286 = vmatpush2.msra.mxu0 0.0
    %287 = vmatprep.subr.mxu0 0.0
    %288 = vmatpush2.msra.mxu0 0.0
    %289 = vmatprep.subr.mxu0 0.0
    %290 = vmatpush2.msra.mxu0 0.0
    %291 = vmatprep.subr.mxu0 0.0
    %292 = vmatpush2.msra.mxu0 0.0
    %293 = vmatprep.mubr.f32.mxu0 0.0
    %294 = vmatmul.mubr.f32.gmra.mxu0 %v202
    %v295 = vpop.f32.mrf.mxu0
    %v296 = vadd.f32 %v227, %v295
    %v297 = vpop.f32.mrf.mxu0
    %298 = vmatprep.mubr.f32.mxu0 0.0
    %299 = vmatmul.mubr.f32.gmra.mxu0 %v203
    %v300 = vpop.f32.mrf.mxu0
    %v301 = vadd.f32 %v227, %v300
    %v302 = vpop.f32.mrf.mxu0
    %303 = vdwg.mxu0
    %304 = vst [vmem:[#allocation10] sm:$0xff] %v296
    %305 = vst [vmem:[#allocation10 + $0x8] sm:$0xff] %v301
    // Predicated region
    $region34: #{tpu_custom_call.1} parent=1 // pred_check
      _
    $region35: #{tpu_custom_call.1} parent=1 // pred_check_branch
      %307 = sbr.rel (0) target = $region37
    $region36: #{tpu_custom_call.1} parent=1 // pred_region
      %s309 = ssub.s32 256, 256
      %310 = vsyncadd [#allocation6], %s309
      %s311 = sshll.u32 [#allocation10], 4
      %s312 = int_to_ptr.vmem [resolvable:$true] %s311
      %317 = dma.vmem_to_hbm [thread:$0]  %s312, 256, %s6, [#allocation6], 128, 128, 8
    $region37: #{tpu_custom_call.1} parent=1 // pred_fallthru
      _
    // Predicated region
    $region38: #{tpu_custom_call.1} parent=1 // pred_check
      _
    $region39: #{tpu_custom_call.1} parent=1 // pred_check_branch
      %319 = sbr.rel (0) target = $region41
    $region40: #{tpu_custom_call.1} parent=1 // pred_region
      %s321 = ssub.s32 256, 256
      %322 = vsyncadd [#allocation12], %s321
      %s323 = sshll.u32 [#allocation11], 4
      %s324 = int_to_ptr.vmem [resolvable:$true] %s323
      %329 = dma.vmem_to_hbm [thread:$0]  %s324, 256, %s7, [#allocation12], 128, 128, 8
    $region41: #{tpu_custom_call.1} parent=1 // pred_fallthru
      _
    // Predicated region
    $region42: #{tpu_custom_call.1} parent=1 // pred_check
      _
    $region43: #{tpu_custom_call.1} parent=1 // pred_check_branch
      %331 = sbr.rel (0) target = $region45
    $region44: #{tpu_custom_call.1} parent=1 // pred_region
      %332 = dma.done [#allocation6], 256
    $region45: #{tpu_custom_call.1} parent=1 // pred_fallthru
      _
    // Predicated region
    $region46: #{tpu_custom_call.1} parent=1 // pred_check
      _
    $region47: #{tpu_custom_call.1} parent=1 // pred_check_branch
      %334 = sbr.rel (0) target = $region49
    $region48: #{tpu_custom_call.1} parent=1 // pred_region
      %335 = dma.done [#allocation12], 256
    $region49: #{tpu_custom_call.1} parent=1 // pred_fallthru
      _
    %336 = vsyncpa [#allocation5], 1
    %337 = vsyncpa [#allocation8], 1
    %338 = vsyncpa [#allocation6], 1
    %339 = vsyncpa [#allocation12], 1

</llo_original>
